<compile_context>
chip_gen: v7x
topology: tpu7x:2x2x1
jax: 0.10.0
libtpu: 0.0.40
codegen_flags: <defaults>
</compile_context>

<pallas_src>
import functools

import jax
import jax.numpy as jnp
from jax.experimental import pallas as pl
from jax.experimental.pallas import tpu as pltpu


LANE = 128


def _round_up(n, m):
    return ((n + m - 1) // m) * m


# ------------------------------- kernel --------------------------------------
def icnn_grad_kernel(x_ref,
                     w0t_ref, b0_ref,          # fused layer-0, forward orientation
                     wd1t_ref, wh1t_ref, b1_ref,  # layer-1 forward orientation
                     w0_ref,                   # fused layer-0, backward orientation
                     wd1s_ref, wh1s_ref,       # layer-1 backward, w_out pre-folded
                     grad_ref, *, beta):
    x = x_ref[...]                                              # [TB, Dp]

    # ---- layer 0 forward (fused direct+hidden) ----
    pre0 = jnp.dot(x, w0t_ref[...],
                   preferred_element_type=jnp.float32) + b0_ref[...]   # [TB, H0p]
    bt0 = beta * pre0
    e0 = jnp.exp(-jnp.abs(bt0))
    inv0 = 1.0 / (1.0 + e0)
    s0 = jnp.where(bt0 >= 0.0, inv0, e0 * inv0)                 # sigmoid(beta*pre0)
    z1 = (jnp.maximum(bt0, 0.0) + jnp.log1p(e0)) * (1.0 / beta)  # softplus (shares e0)

    # ---- layer 1 forward ----
    pre1 = (jnp.dot(x, wd1t_ref[...], preferred_element_type=jnp.float32)
            + jnp.dot(z1, wh1t_ref[...], preferred_element_type=jnp.float32)
            + b1_ref[...])                                      # [TB, H1p]
    bt1 = beta * pre1
    e1 = jnp.exp(-jnp.abs(bt1))
    inv1 = 1.0 / (1.0 + e1)
    s1 = jnp.where(bt1 >= 0.0, inv1, e1 * inv1)                 # sigmoid(beta*pre1)
    # w_out is already folded into wd1s / wh1s, so s1 IS dF/dpre1.

    # ---- manual reverse-mode ----
    gx = jnp.dot(s1, wd1s_ref[...], preferred_element_type=jnp.float32)   # direct path
    g0 = jnp.dot(s1, wh1s_ref[...], preferred_element_type=jnp.float32) * s0
    gx = gx + jnp.dot(g0, w0_ref[...], preferred_element_type=jnp.float32)

    grad_ref[...] = gx.astype(grad_ref.dtype)


# ------------------------- parameter preparation ------------------------------
def prepare_params(params):
    """One-time prep: fuse layer-0, fold w_out, pre-transpose, zero-pad to 128 lanes."""
    wd0, bd0, wh0, bh0, wd1, bd1, wh1, bh1, wout = params
    h0, d = wd0.shape
    h1 = wd1.shape[0]
    Dp = _round_up(d, LANE)
    H0p = _round_up(h0, LANE)
    H1p = _round_up(h1, LANE)

    def pad2(a, r, c):
        # Zero padding is required for correctness: padded rows/cols of the
        # weights and padded bias lanes must not leak into the gradient.
        return jnp.zeros((r, c), jnp.float32).at[:a.shape[0], :a.shape[1]].set(a)

    w0 = wd0 + wh0                       # [h0, d]   fused layer-0 weight
    b0 = bd0 + bh0                       # [1, h0]
    b1 = bd1 + bh1                       # [1, h1]
    wd1s = wout.reshape(-1, 1) * wd1     # [h1, d]   w_out folded in (backward)
    wh1s = wout.reshape(-1, 1) * wh1     # [h1, h0]

    return {
        "w0t":  pad2(w0.T,  Dp,  H0p),   # forward
        "b0":   pad2(b0,    1,   H0p),
        "wd1t": pad2(wd1.T, Dp,  H1p),
        "wh1t": pad2(wh1.T, H0p, H1p),
        "b1":   pad2(b1,    1,   H1p),
        "w0":   pad2(w0,    H0p, Dp),    # backward
        "wd1s": pad2(wd1s,  H1p, Dp),
        "wh1s": pad2(wh1s,  H1p, H0p),
        "d": d, "Dp": Dp, "H0p": H0p, "H1p": H1p,
    }


# --------------------------------- wrapper -----------------------------------
def icnn_transport_map(x, prepped, beta=1.0, block_batch=1024):
    """Pallas-backed equivalent of ICNN.forward (gradient of the convex fn)."""
    B, D = x.shape
    assert D == prepped["d"]
    Dp, H0p, H1p = prepped["Dp"], prepped["H0p"], prepped["H1p"]

    # Batch tile: sublane-aligned; keep VMEM footprint modest (fits v7x 64 MiB).
    TB = min(block_batch, _round_up(B, 8))
    Bp = _round_up(B, TB)
    xp = jnp.zeros((Bp, Dp), x.dtype).at[:B, :D].set(x)

    w0t, b0 = prepped["w0t"], prepped["b0"]
    wd1t, wh1t, b1 = prepped["wd1t"], prepped["wh1t"], prepped["b1"]
    w0, wd1s, wh1s = prepped["w0"], prepped["wd1s"], prepped["wh1s"]

    const = lambda i: (0, 0)             # weights/biases stay VMEM-resident
    in_specs = [
        pl.BlockSpec((TB, Dp), lambda i: (i, 0)),     # x: tiled over batch
        pl.BlockSpec(w0t.shape,  const),
        pl.BlockSpec(b0.shape,   const),
        pl.BlockSpec(wd1t.shape, const),
        pl.BlockSpec(wh1t.shape, const),
        pl.BlockSpec(b1.shape,   const),
        pl.BlockSpec(w0.shape,   const),
        pl.BlockSpec(wd1s.shape, const),
        pl.BlockSpec(wh1s.shape, const),
    ]
    out_specs = pl.BlockSpec((TB, Dp), lambda i: (i, 0))

    # fwd matmuls + bwd matmuls (fused layer-0 counted once each way)
    flops = 2 * Bp * (Dp * H0p + Dp * H1p + H0p * H1p) * 2
    transcendentals = Bp * (2 * H0p + H1p)
    weight_bytes = sum(a.size * 4 for a in (w0t, b0, wd1t, wh1t, b1, w0, wd1s, wh1s))
    bytes_accessed = 2 * Bp * Dp * 4 + weight_bytes

    kernel = functools.partial(icnn_grad_kernel, beta=float(beta))
    out = pl.pallas_call(
        kernel,
        out_shape=jax.ShapeDtypeStruct((Bp, Dp), x.dtype),
        grid=(Bp // TB,),
        in_specs=in_specs,
        out_specs=out_specs,
        compiler_params=pltpu.CompilerParams(
            dimension_semantics=("parallel",),
            vmem_limit_bytes=64 * 1024 * 1024,
        ),
        cost_estimate=pl.CostEstimate(
            flops=flops,
            transcendentals=transcendentals,
            bytes_accessed=bytes_accessed,
        ),
    )(xp, w0t, b0, wd1t, wh1t, b1, w0, wd1s, wh1s)

    return out[:B, :D]


# -------------------- pure-JAX reference (for validation) --------------------
def _softplus_ref(t, beta):
    bt = beta * t
    return (jnp.maximum(bt, 0.0) + jnp.log1p(jnp.exp(-jnp.abs(bt)))) / beta


def _convex_function_ref(x, params, beta):
    wd0, bd0, wh0, bh0, wd1, bd1, wh1, bh1, wout = params
    pre0 = x @ wd0.T + bd0 + x @ wh0.T + bh0
    z1 = _softplus_ref(pre0, beta)
    pre1 = x @ wd1.T + bd1 + z1 @ wh1.T + bh1
    z2 = _softplus_ref(pre1, beta)
    return jnp.sum(z2 @ wout.T)   # + b_out, constant, drops out of the gradient


def _reference_grad(x, params, beta):
    return jax.grad(lambda xx: _convex_function_ref(xx, params, beta))(x)


# -------------------- deterministic parameter construction --------------------
def make_params(key, input_dim, hidden_dims):
    h0, h1 = hidden_dims
    ks = jax.random.split(key, 9)

    def uniform(k, shape, fan_in):
        bound = 1.0 / jnp.sqrt(float(fan_in))
        return jax.random.uniform(k, shape, jnp.float32, -bound, bound)

    # direct layers: Linear(input_dim -> h_i)
    wd0 = uniform(ks[0], (h0, input_dim), input_dim)
    bd0 = uniform(ks[1], (1, h0), input_dim)
    wd1 = uniform(ks[2], (h1, input_dim), input_dim)
    bd1 = uniform(ks[3], (1, h1), input_dim)
    # hidden layers: kaiming-uniform-ish then abs() (non-negativity)
    wh0 = jnp.abs(uniform(ks[4], (h0, input_dim), input_dim) * jnp.sqrt(6.0))
    bh0 = uniform(ks[5], (1, h0), input_dim)
    wh1 = jnp.abs(uniform(ks[6], (h1, h0), h0) * jnp.sqrt(6.0))
    bh1 = uniform(ks[7], (1, h1), h0)
    # output layer: Linear(h1 -> 1)
    wout = uniform(ks[8], (1, h1), h1)
    return (wd0, bd0, wh0, bh0, wd1, bd1, wh1, bh1, wout)


if __name__ == "__main__":
    input_dim = 16
    hidden_dims = [32, 32]
    batch = 8
    beta = 1.0

    key = jax.random.PRNGKey(0)
    kx, kp = jax.random.split(key)
    x = jax.random.normal(kx, (batch, input_dim), jnp.float32)
    params = make_params(kp, input_dim, hidden_dims)
    prepped = prepare_params(params)   # one-time fuse / fold / transpose / pad

    out = icnn_transport_map(x, prepped, beta=beta)
    out = jax.block_until_ready(out)

    ref = _reference_grad(x, params, beta)
    assert out.shape == (batch, input_dim)
    if not jnp.allclose(out, ref, rtol=1e-4, atol=1e-5):
        raise AssertionError("Pallas ICNN gradient does not match JAX autodiff reference")

    # TODO(synk): hessian() / project_weights() are training-time utilities, not part
    # of forward(); they are intentionally not ported to Pallas.
    print("KERNEL_OK")
</pallas_src>

<mosaic_0001>
module attributes {stable_mosaic.version = 11 : i64} {
  func.func @icnn_grad_kernel(%arg0: i32, %arg1: memref<8x128xf32, #tpu.memory_space<vmem>>, %arg2: memref<128x128xf32, #tpu.memory_space<vmem>>, %arg3: memref<1x128xf32, #tpu.memory_space<vmem>>, %arg4: memref<128x128xf32, #tpu.memory_space<vmem>>, %arg5: memref<128x128xf32, #tpu.memory_space<vmem>>, %arg6: memref<1x128xf32, #tpu.memory_space<vmem>>, %arg7: memref<128x128xf32, #tpu.memory_space<vmem>>, %arg8: memref<128x128xf32, #tpu.memory_space<vmem>>, %arg9: memref<128x128xf32, #tpu.memory_space<vmem>>, %arg10: memref<8x128xf32, #tpu.memory_space<vmem>>) attributes {dimension_semantics = [#tpu.dimension_semantics<parallel>], iteration_bounds = array<i64: 1>, scalar_prefetch = 0 : i64, scratch_operands = 0 : i64, tpu.core_type = #tpu.core_type<tc>, window_params = [{transform_indices = @transform_0, window_bounds = array<i64: 8, 128>}, {pipeline_mode = #tpu.pipeline_mode<synchronous>, transform_indices = @transform_1, window_bounds = array<i64: 128, 128>}, {pipeline_mode = #tpu.pipeline_mode<synchronous>, transform_indices = @transform_2, window_bounds = array<i64: 1, 128>}, {pipeline_mode = #tpu.pipeline_mode<synchronous>, transform_indices = @transform_3, window_bounds = array<i64: 128, 128>}, {pipeline_mode = #tpu.pipeline_mode<synchronous>, transform_indices = @transform_4, window_bounds = array<i64: 128, 128>}, {pipeline_mode = #tpu.pipeline_mode<synchronous>, transform_indices = @transform_5, window_bounds = array<i64: 1, 128>}, {pipeline_mode = #tpu.pipeline_mode<synchronous>, transform_indices = @transform_6, window_bounds = array<i64: 128, 128>}, {pipeline_mode = #tpu.pipeline_mode<synchronous>, transform_indices = @transform_7, window_bounds = array<i64: 128, 128>}, {pipeline_mode = #tpu.pipeline_mode<synchronous>, transform_indices = @transform_8, window_bounds = array<i64: 128, 128>}, {transform_indices = @transform_9, window_bounds = array<i64: 8, 128>}]} {
    %c0 = arith.constant 0 : index
    %c0_0 = arith.constant 0 : index
    %0 = vector.load %arg1[%c0, %c0_0] : memref<8x128xf32, #tpu.memory_space<vmem>>, vector<8x128xf32>
    %c0_1 = arith.constant 0 : index
    %c0_2 = arith.constant 0 : index
    %1 = vector.load %arg2[%c0_1, %c0_2] : memref<128x128xf32, #tpu.memory_space<vmem>>, vector<128x128xf32>
    %cst = arith.constant dense<0.000000e+00> : vector<8x128xf32>
    %2 = tpu.matmul %0, %1, %cst {dimension_numbers = #tpu.dot_dimension_numbers<[1], [0], [0], [1], [0, 0, 1, 1], [], []>} : vector<8x128xf32>, vector<128x128xf32>, vector<8x128xf32> -> vector<8x128xf32>
    %c0_3 = arith.constant 0 : index
    %c0_4 = arith.constant 0 : index
    %3 = vector.load %arg3[%c0_3, %c0_4] : memref<1x128xf32, #tpu.memory_space<vmem>>, vector<1x128xf32>
    %4 = vector.broadcast %3 : vector<1x128xf32> to vector<8x128xf32>
    %5 = arith.addf %2, %4 : vector<8x128xf32>
    %cst_5 = arith.constant 1.000000e+00 : f32
    %6 = vector.broadcast %cst_5 : f32 to vector<8x128xf32>
    %7 = arith.mulf %6, %5 : vector<8x128xf32>
    %8 = math.absf %7 : vector<8x128xf32>
    %cst_6 = arith.constant 0.000000e+00 : f32
    %9 = vector.broadcast %cst_6 : f32 to vector<8x128xf32>
    %10 = arith.subf %9, %8 : vector<8x128xf32>
    %11 = math.exp %10 : vector<8x128xf32>
    %cst_7 = arith.constant 1.000000e+00 : f32
    %12 = vector.broadcast %cst_7 : f32 to vector<8x128xf32>
    %13 = arith.addf %12, %11 : vector<8x128xf32>
    %cst_8 = arith.constant 1.000000e+00 : f32
    %14 = vector.broadcast %cst_8 : f32 to vector<8x128xf32>
    %15 = arith.divf %14, %13 : vector<8x128xf32>
    %cst_9 = arith.constant 0.000000e+00 : f32
    %16 = vector.broadcast %cst_9 : f32 to vector<8x128xf32>
    %17 = arith.cmpf oge, %7, %16 : vector<8x128xf32>
    %18 = arith.mulf %11, %15 : vector<8x128xf32>
    %19 = arith.select %17, %15, %18 : vector<8x128xi1>, vector<8x128xf32>
    %cst_10 = arith.constant 0.000000e+00 : f32
    %20 = vector.broadcast %cst_10 : f32 to vector<8x128xf32>
    %21 = arith.maximumf %7, %20 : vector<8x128xf32>
    %22 = math.log1p %11 : vector<8x128xf32>
    %23 = arith.addf %21, %22 : vector<8x128xf32>
    %cst_11 = arith.constant 1.000000e+00 : f32
    %24 = vector.broadcast %cst_11 : f32 to vector<8x128xf32>
    %25 = arith.mulf %23, %24 : vector<8x128xf32>
    %c0_12 = arith.constant 0 : index
    %c0_13 = arith.constant 0 : index
    %26 = vector.load %arg4[%c0_12, %c0_13] : memref<128x128xf32, #tpu.memory_space<vmem>>, vector<128x128xf32>
    %cst_14 = arith.constant dense<0.000000e+00> : vector<8x128xf32>
    %27 = tpu.matmul %0, %26, %cst_14 {dimension_numbers = #tpu.dot_dimension_numbers<[1], [0], [0], [1], [0, 0, 1, 1], [], []>} : vector<8x128xf32>, vector<128x128xf32>, vector<8x128xf32> -> vector<8x128xf32>
    %c0_15 = arith.constant 0 : index
    %c0_16 = arith.constant 0 : index
    %28 = vector.load %arg5[%c0_15, %c0_16] : memref<128x128xf32, #tpu.memory_space<vmem>>, vector<128x128xf32>
    %cst_17 = arith.constant dense<0.000000e+00> : vector<8x128xf32>
    %29 = tpu.matmul %25, %28, %cst_17 {dimension_numbers = #tpu.dot_dimension_numbers<[1], [0], [0], [1], [0, 0, 1, 1], [], []>} : vector<8x128xf32>, vector<128x128xf32>, vector<8x128xf32> -> vector<8x128xf32>
    %30 = arith.addf %27, %29 : vector<8x128xf32>
    %c0_18 = arith.constant 0 : index
    %c0_19 = arith.constant 0 : index
    %31 = vector.load %arg6[%c0_18, %c0_19] : memref<1x128xf32, #tpu.memory_space<vmem>>, vector<1x128xf32>
    %32 = vector.broadcast %31 : vector<1x128xf32> to vector<8x128xf32>
    %33 = arith.addf %30, %32 : vector<8x128xf32>
    %cst_20 = arith.constant 1.000000e+00 : f32
    %34 = vector.broadcast %cst_20 : f32 to vector<8x128xf32>
    %35 = arith.mulf %34, %33 : vector<8x128xf32>
    %36 = math.absf %35 : vector<8x128xf32>
    %cst_21 = arith.constant 0.000000e+00 : f32
    %37 = vector.broadcast %cst_21 : f32 to vector<8x128xf32>
    %38 = arith.subf %37, %36 : vector<8x128xf32>
    %39 = math.exp %38 : vector<8x128xf32>
    %cst_22 = arith.constant 1.000000e+00 : f32
    %40 = vector.broadcast %cst_22 : f32 to vector<8x128xf32>
    %41 = arith.addf %40, %39 : vector<8x128xf32>
    %cst_23 = arith.constant 1.000000e+00 : f32
    %42 = vector.broadcast %cst_23 : f32 to vector<8x128xf32>
    %43 = arith.divf %42, %41 : vector<8x128xf32>
    %cst_24 = arith.constant 0.000000e+00 : f32
    %44 = vector.broadcast %cst_24 : f32 to vector<8x128xf32>
    %45 = arith.cmpf oge, %35, %44 : vector<8x128xf32>
    %46 = arith.mulf %39, %43 : vector<8x128xf32>
    %47 = arith.select %45, %43, %46 : vector<8x128xi1>, vector<8x128xf32>
    %c0_25 = arith.constant 0 : index
    %c0_26 = arith.constant 0 : index
    %48 = vector.load %arg8[%c0_25, %c0_26] : memref<128x128xf32, #tpu.memory_space<vmem>>, vector<128x128xf32>
    %cst_27 = arith.constant dense<0.000000e+00> : vector<8x128xf32>
    %49 = tpu.matmul %47, %48, %cst_27 {dimension_numbers = #tpu.dot_dimension_numbers<[1], [0], [0], [1], [0, 0, 1, 1], [], []>} : vector<8x128xf32>, vector<128x128xf32>, vector<8x128xf32> -> vector<8x128xf32>
    %c0_28 = arith.constant 0 : index
    %c0_29 = arith.constant 0 : index
    %50 = vector.load %arg9[%c0_28, %c0_29] : memref<128x128xf32, #tpu.memory_space<vmem>>, vector<128x128xf32>
    %cst_30 = arith.constant dense<0.000000e+00> : vector<8x128xf32>
    %51 = tpu.matmul %47, %50, %cst_30 {dimension_numbers = #tpu.dot_dimension_numbers<[1], [0], [0], [1], [0, 0, 1, 1], [], []>} : vector<8x128xf32>, vector<128x128xf32>, vector<8x128xf32> -> vector<8x128xf32>
    %52 = arith.mulf %51, %19 : vector<8x128xf32>
    %c0_31 = arith.constant 0 : index
    %c0_32 = arith.constant 0 : index
    %53 = vector.load %arg7[%c0_31, %c0_32] : memref<128x128xf32, #tpu.memory_space<vmem>>, vector<128x128xf32>
    %cst_33 = arith.constant dense<0.000000e+00> : vector<8x128xf32>
    %54 = tpu.matmul %52, %53, %cst_33 {dimension_numbers = #tpu.dot_dimension_numbers<[1], [0], [0], [1], [0, 0, 1, 1], [], []>} : vector<8x128xf32>, vector<128x128xf32>, vector<8x128xf32> -> vector<8x128xf32>
    %55 = arith.addf %49, %54 : vector<8x128xf32>
    %c0_34 = arith.constant 0 : index
    %c0_35 = arith.constant 0 : index
    %56 = vector.load %arg10[%c0_34, %c0_35] : memref<8x128xf32, #tpu.memory_space<vmem>>, vector<8x128xf32>
    tpu.vector_store %arg10[%c0_34, %c0_35], %55 {strides = array<i32>} : memref<8x128xf32, #tpu.memory_space<vmem>>, vector<8x128xf32>,
    return
  }
  func.func @transform_0(%arg0: i32) -> (i32, i32) {
    %c0_i32 = arith.constant 0 : i32
    %c0_i32_0 = arith.constant 0 : i32
    return %arg0, %c0_i32 : i32, i32
  }
  func.func @transform_1(%arg0: i32) -> (i32, i32) {
    %c0_i32 = arith.constant 0 : i32
    %c0_i32_0 = arith.constant 0 : i32
    %c0_i32_1 = arith.constant 0 : i32
    return %c0_i32, %c0_i32_0 : i32, i32
  }
  func.func @transform_2(%arg0: i32) -> (i32, i32) {
    %c0_i32 = arith.constant 0 : i32
    %c0_i32_0 = arith.constant 0 : i32
    %c0_i32_1 = arith.constant 0 : i32
    return %c0_i32, %c0_i32_0 : i32, i32
  }
  func.func @transform_3(%arg0: i32) -> (i32, i32) {
    %c0_i32 = arith.constant 0 : i32
    %c0_i32_0 = arith.constant 0 : i32
    %c0_i32_1 = arith.constant 0 : i32
    return %c0_i32, %c0_i32_0 : i32, i32
  }
  func.func @transform_4(%arg0: i32) -> (i32, i32) {
    %c0_i32 = arith.constant 0 : i32
    %c0_i32_0 = arith.constant 0 : i32
    %c0_i32_1 = arith.constant 0 : i32
    return %c0_i32, %c0_i32_0 : i32, i32
  }
  func.func @transform_5(%arg0: i32) -> (i32, i32) {
    %c0_i32 = arith.constant 0 : i32
    %c0_i32_0 = arith.constant 0 : i32
    %c0_i32_1 = arith.constant 0 : i32
    return %c0_i32, %c0_i32_0 : i32, i32
  }
  func.func @transform_6(%arg0: i32) -> (i32, i32) {
    %c0_i32 = arith.constant 0 : i32
    %c0_i32_0 = arith.constant 0 : i32
    %c0_i32_1 = arith.constant 0 : i32
    return %c0_i32, %c0_i32_0 : i32, i32
  }
  func.func @transform_7(%arg0: i32) -> (i32, i32) {
    %c0_i32 = arith.constant 0 : i32
    %c0_i32_0 = arith.constant 0 : i32
    %c0_i32_1 = arith.constant 0 : i32
    return %c0_i32, %c0_i32_0 : i32, i32
  }
  func.func @transform_8(%arg0: i32) -> (i32, i32) {
    %c0_i32 = arith.constant 0 : i32
    %c0_i32_0 = arith.constant 0 : i32
    %c0_i32_1 = arith.constant 0 : i32
    return %c0_i32, %c0_i32_0 : i32, i32
  }
  func.func @transform_9(%arg0: i32) -> (i32, i32) {
    %c0_i32 = arith.constant 0 : i32
    %c0_i32_0 = arith.constant 0 : i32
    return %arg0, %c0_i32 : i32, i32
  }
}

</mosaic_0001>

<llo_original>
// kernel: tpu_custom_call.1
$region0: #{tpu_custom_call.1}
  #allocation0 [shape = 'u32[]', space=smem, size = 0x4, offset = 0x4, fixed_abs, tag = 'smem constant byte address 0x4 - core index']
  #allocation1 [shape = 'u32[144,128]{1,0:T(1,128)}', space=vmem, size = 0x12000, scoped, tag = 'internal scratch']
  %s0 = inlined_call_operand.hbm [shape: f32[8,128], index: 0, kind: input, shape index: {}]
  %s1 = inlined_call_operand.hbm [shape: f32[128,128], index: 1, kind: input, shape index: {}]
  %s2 = inlined_call_operand.hbm [shape: f32[1,128], index: 2, kind: input, shape index: {}]
  %s3 = inlined_call_operand.hbm [shape: f32[128,128], index: 3, kind: input, shape index: {}]
  %s4 = inlined_call_operand.hbm [shape: f32[128,128], index: 4, kind: input, shape index: {}]
  %s5 = inlined_call_operand.hbm [shape: f32[1,128], index: 5, kind: input, shape index: {}]
  %s6 = inlined_call_operand.hbm [shape: f32[128,128], index: 6, kind: input, shape index: {}]
  %s7 = inlined_call_operand.hbm [shape: f32[128,128], index: 7, kind: input, shape index: {}]
  %s8 = inlined_call_operand.hbm [shape: f32[128,128], index: 8, kind: input, shape index: {}]
  %s9 = inlined_call_operand.hbm [shape: f32[8,128], index: 9, kind: output, shape index: {}]
  %s10 = sld [smem:[#allocation0]]
  $region82: #{tpu_custom_call.1} parent=0
    _
  %s12 = ssub.s32 1, %s10
  %s13 = scalar_select 0, %s12, %s10
  $region1: #{tpu_custom_call.1} parent=0
    #allocation2 [shape = 'u8[4096]{0}', space=vmem, size = 0x1000, scoped, tag = 'input window, operand 0, single buffered']
    #allocation3 [shape = 's32[1]{0}', space=sflag, size = 0x4, scoped, tag = 'scoped memory for tpu_custom_call.1']
    #allocation4 [shape = 's32[1]{0}', space=sflag, size = 0x4, scoped, tag = 'scoped memory for tpu_custom_call.1']
    #allocation5 [shape = 'u8[65536]{0}', space=vmem, size = 0x10000, scoped, tag = 'input window, operand 1, single buffered']
    #allocation6 [shape = 's32[1]{0}', space=sflag, size = 0x4, scoped, tag = 'scoped memory for tpu_custom_call.1']
    #allocation7 [shape = 'u8[512]{0}', space=vmem, size = 0x400, scoped, tag = 'input window, operand 2, single buffered']
    #allocation8 [shape = 'u8[65536]{0}', space=vmem, size = 0x10000, scoped, tag = 'input window, operand 3, single buffered']
    #allocation9 [shape = 's32[1]{0}', space=sflag, size = 0x4, scoped, tag = 'scoped memory for tpu_custom_call.1']
    #allocation10 [shape = 'u8[65536]{0}', space=vmem, size = 0x10000, scoped, tag = 'input window, operand 4, single buffered']
    #allocation11 [shape = 'u8[512]{0}', space=vmem, size = 0x400, scoped, tag = 'input window, operand 5, single buffered']
    #allocation12 [shape = 's32[1]{0}', space=sflag, size = 0x4, scoped, tag = 'scoped memory for tpu_custom_call.1']
    #allocation13 [shape = 'u8[65536]{0}', space=vmem, size = 0x10000, scoped, tag = 'input window, operand 6, single buffered']
    #allocation14 [shape = 'u8[65536]{0}', space=vmem, size = 0x10000, scoped, tag = 'input window, operand 7, single buffered']
    #allocation15 [shape = 's32[1]{0}', space=sflag, size = 0x4, scoped, tag = 'scoped memory for tpu_custom_call.1']
    #allocation16 [shape = 'u8[65536]{0}', space=vmem, size = 0x10000, scoped, tag = 'input window, operand 8, single buffered']
    #allocation17 [shape = 'u8[4096]{0}', space=vmem, size = 0x1000, scoped, tag = 'output window, operand 0, single buffered']
    %14 = vsyncpa [#allocation3], 0
    %15 = vsyncpa [#allocation6], 0
    %16 = vsyncpa [#allocation9], 0
    %17 = vsyncpa [#allocation12], 0
    %18 = vsyncpa [#allocation15], 0
    %19 = vsyncpa [#allocation4], 0
    // Predicated region
    $region2: #{tpu_custom_call.1} parent=1 // pred_check
      _
    $region3: #{tpu_custom_call.1} parent=1 // pred_check_branch
      %21 = sbr.rel (0) target = $region5
    $region4: #{tpu_custom_call.1} parent=1 // pred_region
      %s23 = ssub.s32 128, 128
      %24 = vsyncadd [#allocation3], %s23
      %s26 = sshll.u32 [#allocation2], 4
      %s27 = int_to_ptr.vmem [resolvable:$true] %s26
      %29 = dma.hbm_to_vmem [thread:$0]  %s0, 128, %s27, [#allocation3]
    $region5: #{tpu_custom_call.1} parent=1 // pred_fallthru
      _
    // Predicated region
    $region6: #{tpu_custom_call.1} parent=1 // pred_check
      _
    $region7: #{tpu_custom_call.1} parent=1 // pred_check_branch
      %31 = sbr.rel (0) target = $region9
    $region8: #{tpu_custom_call.1} parent=1 // pred_region
      %s33 = ssub.s32 2048, 2048
      %34 = vsyncadd [#allocation6], %s33
      %s35 = sshll.u32 [#allocation5], 4
      %s36 = int_to_ptr.vmem [resolvable:$true] %s35
      %41 = dma.hbm_to_vmem [thread:$0]  %s1, 2048, %s36, [#allocation6], 128, 128, 8
    $region9: #{tpu_custom_call.1} parent=1 // pred_fallthru
      _
    // Predicated region
    $region10: #{tpu_custom_call.1} parent=1 // pred_check
      _
    $region11: #{tpu_custom_call.1} parent=1 // pred_check_branch
      %43 = sbr.rel (0) target = $region13
    $region12: #{tpu_custom_call.1} parent=1 // pred_region
      %s45 = ssub.s32 16, 16
      %46 = vsyncadd [#allocation6], %s45
      %s48 = sshll.u32 [#allocation7], 4
      %s49 = int_to_ptr.vmem [resolvable:$true] %s48
      %51 = dma.hbm_to_vmem [thread:$0]  %s2, 16, %s49, [#allocation6]
    $region13: #{tpu_custom_call.1} parent=1 // pred_fallthru
      _
    // Predicated region
    $region14: #{tpu_custom_call.1} parent=1 // pred_check
      _
    $region15: #{tpu_custom_call.1} parent=1 // pred_check_branch
      %53 = sbr.rel (0) target = $region17
    $region16: #{tpu_custom_call.1} parent=1 // pred_region
      %s55 = ssub.s32 2048, 2048
      %56 = vsyncadd [#allocation9], %s55
      %s57 = sshll.u32 [#allocation8], 4
      %s58 = int_to_ptr.vmem [resolvable:$true] %s57
      %63 = dma.hbm_to_vmem [thread:$0]  %s3, 2048, %s58, [#allocation9], 128, 128, 8
    $region17: #{tpu_custom_call.1} parent=1 // pred_fallthru
      _
    // Predicated region
    $region18: #{tpu_custom_call.1} parent=1 // pred_check
      _
    $region19: #{tpu_custom_call.1} parent=1 // pred_check_branch
      %65 = sbr.rel (0) target = $region21
    $region20: #{tpu_custom_call.1} parent=1 // pred_region
      %s67 = ssub.s32 2048, 2048
      %68 = vsyncadd [#allocation9], %s67
      %s69 = sshll.u32 [#allocation10], 4
      %s70 = int_to_ptr.vmem [resolvable:$true] %s69
      %75 = dma.hbm_to_vmem [thread:$0]  %s4, 2048, %s70, [#allocation9], 128, 128, 8
    $region21: #{tpu_custom_call.1} parent=1 // pred_fallthru
      _
    // Predicated region
    $region22: #{tpu_custom_call.1} parent=1 // pred_check
      _
    $region23: #{tpu_custom_call.1} parent=1 // pred_check_branch
      %77 = sbr.rel (0) target = $region25
    $region24: #{tpu_custom_call.1} parent=1 // pred_region
      %s79 = ssub.s32 16, 16
      %80 = vsyncadd [#allocation12], %s79
      %s82 = sshll.u32 [#allocation11], 4
      %s83 = int_to_ptr.vmem [resolvable:$true] %s82
      %85 = dma.hbm_to_vmem [thread:$0]  %s5, 16, %s83, [#allocation12]
    $region25: #{tpu_custom_call.1} parent=1 // pred_fallthru
      _
    // Predicated region
    $region26: #{tpu_custom_call.1} parent=1 // pred_check
      _
    $region27: #{tpu_custom_call.1} parent=1 // pred_check_branch
      %87 = sbr.rel (0) target = $region29
    $region28: #{tpu_custom_call.1} parent=1 // pred_region
      %s89 = ssub.s32 2048, 2048
      %90 = vsyncadd [#allocation12], %s89
      %s91 = sshll.u32 [#allocation13], 4
      %s92 = int_to_ptr.vmem [resolvable:$true] %s91
      %97 = dma.hbm_to_vmem [thread:$0]  %s6, 2048, %s92, [#allocation12], 128, 128, 8
    $region29: #{tpu_custom_call.1} parent=1 // pred_fallthru
      _
    // Predicated region
    $region30: #{tpu_custom_call.1} parent=1 // pred_check
      _
    $region31: #{tpu_custom_call.1} parent=1 // pred_check_branch
      %99 = sbr.rel (0) target = $region33
    $region32: #{tpu_custom_call.1} parent=1 // pred_region
      %s101 = ssub.s32 2048, 2048
      %102 = vsyncadd [#allocation15], %s101
      %s103 = sshll.u32 [#allocation14], 4
      %s104 = int_to_ptr.vmem [resolvable:$true] %s103
      %109 = dma.hbm_to_vmem [thread:$0]  %s7, 2048, %s104, [#allocation15], 128, 128, 8
    $region33: #{tpu_custom_call.1} parent=1 // pred_fallthru
      _
    // Predicated region
    $region34: #{tpu_custom_call.1} parent=1 // pred_check
      _
    $region35: #{tpu_custom_call.1} parent=1 // pred_check_branch
      %111 = sbr.rel (0) target = $region37
    $region36: #{tpu_custom_call.1} parent=1 // pred_region
      %s113 = ssub.s32 2048, 2048
      %114 = vsyncadd [#allocation15], %s113
      %s115 = sshll.u32 [#allocation16], 4
      %s116 = int_to_ptr.vmem [resolvable:$true] %s115
      %121 = dma.hbm_to_vmem [thread:$0]  %s8, 2048, %s116, [#allocation15], 128, 128, 8
    $region37: #{tpu_custom_call.1} parent=1 // pred_fallthru
      _
    // Predicated region
    $region38: #{tpu_custom_call.1} parent=1 // pred_check
      _
    $region39: #{tpu_custom_call.1} parent=1 // pred_check_branch
      %123 = sbr.rel (0) target = $region41
    $region40: #{tpu_custom_call.1} parent=1 // pred_region
      %124 = dma.done [#allocation3], 128
    $region41: #{tpu_custom_call.1} parent=1 // pred_fallthru
      _
    // Predicated region
    $region42: #{tpu_custom_call.1} parent=1 // pred_check
      _
    $region43: #{tpu_custom_call.1} parent=1 // pred_check_branch
      %126 = sbr.rel (0) target = $region45
    $region44: #{tpu_custom_call.1} parent=1 // pred_region
      %127 = dma.done [#allocation6], 2048
    $region45: #{tpu_custom_call.1} parent=1 // pred_fallthru
      _
    // Predicated region
    $region46: #{tpu_custom_call.1} parent=1 // pred_check
      _
    $region47: #{tpu_custom_call.1} parent=1 // pred_check_branch
      %129 = sbr.rel (0) target = $region49
    $region48: #{tpu_custom_call.1} parent=1 // pred_region
      %130 = dma.done [#allocation6], 16
    $region49: #{tpu_custom_call.1} parent=1 // pred_fallthru
      _
    // Predicated region
    $region50: #{tpu_custom_call.1} parent=1 // pred_check
      _
    $region51: #{tpu_custom_call.1} parent=1 // pred_check_branch
      %132 = sbr.rel (0) target = $region53
    $region52: #{tpu_custom_call.1} parent=1 // pred_region
      %133 = dma.done [#allocation9], 2048
    $region53: #{tpu_custom_call.1} parent=1 // pred_fallthru
      _
    // Predicated region
    $region54: #{tpu_custom_call.1} parent=1 // pred_check
      _
    $region55: #{tpu_custom_call.1} parent=1 // pred_check_branch
      %135 = sbr.rel (0) target = $region57
    $region56: #{tpu_custom_call.1} parent=1 // pred_region
      %136 = dma.done [#allocation9], 2048
    $region57: #{tpu_custom_call.1} parent=1 // pred_fallthru
      _
    // Predicated region
    $region58: #{tpu_custom_call.1} parent=1 // pred_check
      _
    $region59: #{tpu_custom_call.1} parent=1 // pred_check_branch
      %138 = sbr.rel (0) target = $region61
    $region60: #{tpu_custom_call.1} parent=1 // pred_region
      %139 = dma.done [#allocation12], 16
    $region61: #{tpu_custom_call.1} parent=1 // pred_fallthru
      _
    // Predicated region
    $region62: #{tpu_custom_call.1} parent=1 // pred_check
      _
    $region63: #{tpu_custom_call.1} parent=1 // pred_check_branch
      %141 = sbr.rel (0) target = $region65
    $region64: #{tpu_custom_call.1} parent=1 // pred_region
      %142 = dma.done [#allocation12], 2048
    $region65: #{tpu_custom_call.1} parent=1 // pred_fallthru
      _
    // Predicated region
    $region66: #{tpu_custom_call.1} parent=1 // pred_check
      _
    $region67: #{tpu_custom_call.1} parent=1 // pred_check_branch
      %144 = sbr.rel (0) target = $region69
    $region68: #{tpu_custom_call.1} parent=1 // pred_region
      %145 = dma.done [#allocation15], 2048
    $region69: #{tpu_custom_call.1} parent=1 // pred_fallthru
      _
    // Predicated region
    $region70: #{tpu_custom_call.1} parent=1 // pred_check
      _
    $region71: #{tpu_custom_call.1} parent=1 // pred_check_branch
      %147 = sbr.rel (0) target = $region73
    $region72: #{tpu_custom_call.1} parent=1 // pred_region
      %148 = dma.done [#allocation15], 2048
    $region73: #{tpu_custom_call.1} parent=1 // pred_fallthru
      _
    %v149 = vld [vmem:[#allocation2] sm:$0xff]
    %v150 = vld [vmem:[#allocation5] sm:$0xff]
    %v151 = vld [vmem:[#allocation5 + $0x8] sm:$0xff]
    %v152 = vld [vmem:[#allocation5 + $0x10] sm:$0xff]
    %v153 = vld [vmem:[#allocation5 + $0x18] sm:$0xff]
    %v154 = vld [vmem:[#allocation5 + $0x20] sm:$0xff]
    %v155 = vld [vmem:[#allocation5 + $0x28] sm:$0xff]
    %v156 = vld [vmem:[#allocation5 + $0x30] sm:$0xff]
    %v157 = vld [vmem:[#allocation5 + $0x38] sm:$0xff]
    %v158 = vld [vmem:[#allocation5 + $0x40] sm:$0xff]
    %v159 = vld [vmem:[#allocation5 + $0x48] sm:$0xff]
    %v160 = vld [vmem:[#allocation5 + $0x50] sm:$0xff]
    %v161 = vld [vmem:[#allocation5 + $0x58] sm:$0xff]
    %v162 = vld [vmem:[#allocation5 + $0x60] sm:$0xff]
    %v163 = vld [vmem:[#allocation5 + $0x68] sm:$0xff]
    %v164 = vld [vmem:[#allocation5 + $0x70] sm:$0xff]
    %v165 = vld [vmem:[#allocation5 + $0x78] sm:$0xff]
    %v166 = vld [vmem:[#allocation7] sm:$0x1]
    %v168 = vlaneseq
    %v169 = vshrl.u32 %v168, 7
    %v170 = vsub.s32 0, %v169
    %v171 = vrot.slane %v166, %v170
    %173 = vmatprep.subr.mxu0 0.0
    %174 = vmatpush1.msra.mxu0 %v150
    %175 = vmatprep.subr.mxu0 0.0
    %176 = vmatpush1.msra.mxu0 %v151
    %177 = vmatprep.subr.mxu0 0.0
    %178 = vmatpush1.msra.mxu0 %v152
    %179 = vmatprep.subr.mxu0 0.0
    %180 = vmatpush1.msra.mxu0 %v153
    %181 = vmatprep.subr.mxu0 0.0
    %182 = vmatpush1.msra.mxu0 %v154
    %183 = vmatprep.subr.mxu0 0.0
    %184 = vmatpush1.msra.mxu0 %v155
    %185 = vmatprep.subr.mxu0 0.0
    %186 = vmatpush1.msra.mxu0 %v156
    %187 = vmatprep.subr.mxu0 0.0
    %188 = vmatpush1.msra.mxu0 %v157
    %189 = vmatprep.subr.mxu0 0.0
    %190 = vmatpush1.msra.mxu0 %v158
    %191 = vmatprep.subr.mxu0 0.0
    %192 = vmatpush1.msra.mxu0 %v159
    %193 = vmatprep.subr.mxu0 0.0
    %194 = vmatpush1.msra.mxu0 %v160
    %195 = vmatprep.subr.mxu0 0.0
    %196 = vmatpush1.msra.mxu0 %v161
    %197 = vmatprep.subr.mxu0 0.0
    %198 = vmatpush1.msra.mxu0 %v162
    %199 = vmatprep.subr.mxu0 0.0
    %200 = vmatpush1.msra.mxu0 %v163
    %201 = vmatprep.subr.mxu0 0.0
    %202 = vmatpush1.msra.mxu0 %v164
    %203 = vmatprep.subr.mxu0 0.0
    %204 = vmatpush1.msra.mxu0 %v165
    %205 = vmatprep.subr.mxu0 0.0
    %206 = vmatpush1.msra.mxu0 0.0
    %207 = vmatprep.subr.mxu0 0.0
    %208 = vmatpush1.msra.mxu0 0.0
    %209 = vmatprep.subr.mxu0 0.0
    %210 = vmatpush1.msra.mxu0 0.0
    %211 = vmatprep.subr.mxu0 0.0
    %212 = vmatpush1.msra.mxu0 0.0
    %213 = vmatprep.subr.mxu0 0.0
    %214 = vmatpush1.msra.mxu0 0.0
    %215 = vmatprep.subr.mxu0 0.0
    %216 = vmatpush1.msra.mxu0 0.0
    %217 = vmatprep.subr.mxu0 0.0
    %218 = vmatpush1.msra.mxu0 0.0
    %219 = vmatprep.subr.mxu0 0.0
    %220 = vmatpush1.msra.mxu0 0.0
    %221 = vmatprep.subr.mxu0 0.0
    %222 = vmatpush1.msra.mxu0 0.0
    %223 = vmatprep.subr.mxu0 0.0
    %224 = vmatpush1.msra.mxu0 0.0
    %225 = vmatprep.subr.mxu0 0.0
    %226 = vmatpush1.msra.mxu0 0.0
    %227 = vmatprep.subr.mxu0 0.0
    %228 = vmatpush1.msra.mxu0 0.0
    %229 = vmatprep.subr.mxu0 0.0
    %230 = vmatpush1.msra.mxu0 0.0
    %231 = vmatprep.subr.mxu0 0.0
    %232 = vmatpush1.msra.mxu0 0.0
    %233 = vmatprep.subr.mxu0 0.0
    %234 = vmatpush1.msra.mxu0 0.0
    %235 = vmatprep.subr.mxu0 0.0
    %236 = vmatpush1.msra.mxu0 0.0
    %237 = vmatprep.mubr.f32.mxu0 0.0
    %238 = vmatmul.mubr.f32.gmra.mrb[0].mxu0 %v149
    %v239 = vpop.f32.mrb[0].mxu0
    %v240 = vadd.f32 %v171, %v239
    %v241 = vpop.f32.mrb[0].mxu0
    %242 = vdwg.mxu0
    %v243 = vand.u32 2147483647, %v240
    %v244 = vsub.f32 0.0, %v243
    %v245 = vmul.f32 %v244, 1.442695
    %v246 = vpow.pop %v245
    %v247 = vadd.f32 %v246, 1.0
    %v248 = vrcp.pop %v247
    %v249 = vmul.f32 1.0, %v248
    %vm250 = vcmp.ge.f32.partialorder %v240, 0.0
    %v251 = vmul.f32 %v246, %v249
    %v252 = vsel %vm250, %v249, %v251
    %v253 = vmax.f32 %v240, 0.0
    %v254 = vadd.f32 %v246, 1.0
    %v255 = vlog2.pop %v254
    %v256 = vmul.f32 %v255, 0.6931472
    %v257 = vmul.f32 -0.5, %v246
    %v258 = vadd.f32 %v257, 1.0
    %v259 = vmul.f32 %v258, %v246
    %v260 = vand.u32 2147483647, %v246
    %vm261 = vcmp.lt.f32.partialorder %v260, 0.0004427343
    %v262 = vsel %vm261, %v259, %v256
    %v263 = vadd.f32 %v253, %v262
    %v264 = vld [vmem:[#allocation8] sm:$0xff]
    %v265 = vld [vmem:[#allocation8 + $0x8] sm:$0xff]
    %v266 = vld [vmem:[#allocation8 + $0x10] sm:$0xff]
    %v267 = vld [vmem:[#allocation8 + $0x18] sm:$0xff]
    %v268 = vld [vmem:[#allocation8 + $0x20] sm:$0xff]
    %v269 = vld [vmem:[#allocation8 + $0x28] sm:$0xff]
    %v270 = vld [vmem:[#allocation8 + $0x30] sm:$0xff]
    %v271 = vld [vmem:[#allocation8 + $0x38] sm:$0xff]
    %v272 = vld [vmem:[#allocation8 + $0x40] sm:$0xff]
    %v273 = vld [vmem:[#allocation8 + $0x48] sm:$0xff]
    %v274 = vld [vmem:[#allocation8 + $0x50] sm:$0xff]
    %v275 = vld [vmem:[#allocation8 + $0x58] sm:$0xff]
    %v276 = vld [vmem:[#allocation8 + $0x60] sm:$0xff]
    %v277 = vld [vmem:[#allocation8 + $0x68] sm:$0xff]
    %v278 = vld [vmem:[#allocation8 + $0x70] sm:$0xff]
    %v279 = vld [vmem:[#allocation8 + $0x78] sm:$0xff]
    %v280 = vld [vmem:[#allocation10] sm:$0xff]
    %v281 = vld [vmem:[#allocation10 + $0x8] sm:$0xff]
    %v282 = vld [vmem:[#allocation10 + $0x10] sm:$0xff]
    %v283 = vld [vmem:[#allocation10 + $0x18] sm:$0xff]
    %v284 = vld [vmem:[#allocation10 + $0x20] sm:$0xff]
    %v285 = vld [vmem:[#allocation10 + $0x28] sm:$0xff]
    %v286 = vld [vmem:[#allocation10 + $0x30] sm:$0xff]
    %v287 = vld [vmem:[#allocation10 + $0x38] sm:$0xff]
    %v288 = vld [vmem:[#allocation10 + $0x40] sm:$0xff]
    %v289 = vld [vmem:[#allocation10 + $0x48] sm:$0xff]
    %v290 = vld [vmem:[#allocation10 + $0x50] sm:$0xff]
    %v291 = vld [vmem:[#allocation10 + $0x58] sm:$0xff]
    %v292 = vld [vmem:[#allocation10 + $0x60] sm:$0xff]
    %v293 = vld [vmem:[#allocation10 + $0x68] sm:$0xff]
    %v294 = vld [vmem:[#allocation10 + $0x70] sm:$0xff]
    %v295 = vld [vmem:[#allocation10 + $0x78] sm:$0xff]
    %296 = vmatprep.subr.mxu0 0.0
    %297 = vmatpush1.msra.mxu0 %v280
    %298 = vmatprep.subr.mxu0 0.0
    %299 = vmatpush1.msra.mxu0 %v281
    %300 = vmatprep.subr.mxu0 0.0
    %301 = vmatpush1.msra.mxu0 %v282
    %302 = vmatprep.subr.mxu0 0.0
    %303 = vmatpush1.msra.mxu0 %v283
    %304 = vmatprep.subr.mxu0 0.0
    %305 = vmatpush1.msra.mxu0 %v284
    %306 = vmatprep.subr.mxu0 0.0
    %307 = vmatpush1.msra.mxu0 %v285
    %308 = vmatprep.subr.mxu0 0.0
    %309 = vmatpush1.msra.mxu0 %v286
    %310 = vmatprep.subr.mxu0 0.0
    %311 = vmatpush1.msra.mxu0 %v287
    %312 = vmatprep.subr.mxu0 0.0
    %313 = vmatpush1.msra.mxu0 %v288
    %314 = vmatprep.subr.mxu0 0.0
    %315 = vmatpush1.msra.mxu0 %v289
    %316 = vmatprep.subr.mxu0 0.0
    %317 = vmatpush1.msra.mxu0 %v290
    %318 = vmatprep.subr.mxu0 0.0
    %319 = vmatpush1.msra.mxu0 %v291
    %320 = vmatprep.subr.mxu0 0.0
    %321 = vmatpush1.msra.mxu0 %v292
    %322 = vmatprep.subr.mxu0 0.0
    %323 = vmatpush1.msra.mxu0 %v293
    %324 = vmatprep.subr.mxu0 0.0
    %325 = vmatpush1.msra.mxu0 %v294
    %326 = vmatprep.subr.mxu0 0.0
    %327 = vmatpush1.msra.mxu0 %v295
    %328 = vmatprep.subr.mxu0 0.0
    %329 = vmatpush1.msra.mxu0 0.0
    %330 = vmatprep.subr.mxu0 0.0
    %331 = vmatpush1.msra.mxu0 0.0
    %332 = vmatprep.subr.mxu0 0.0
    %333 = vmatpush1.msra.mxu0 0.0
    %334 = vmatprep.subr.mxu0 0.0
    %335 = vmatpush1.msra.mxu0 0.0
    %336 = vmatprep.subr.mxu0 0.0
    %337 = vmatpush1.msra.mxu0 0.0
    %338 = vmatprep.subr.mxu0 0.0
    %339 = vmatpush1.msra.mxu0 0.0
    %340 = vmatprep.subr.mxu0 0.0
    %341 = vmatpush1.msra.mxu0 0.0
    %342 = vmatprep.subr.mxu0 0.0
    %343 = vmatpush1.msra.mxu0 0.0
    %344 = vmatprep.subr.mxu0 0.0
    %345 = vmatpush1.msra.mxu0 0.0
    %346 = vmatprep.subr.mxu0 0.0
    %347 = vmatpush1.msra.mxu0 0.0
    %348 = vmatprep.subr.mxu0 0.0
    %349 = vmatpush1.msra.mxu0 0.0
    %350 = vmatprep.subr.mxu0 0.0
    %351 = vmatpush1.msra.mxu0 0.0
    %352 = vmatprep.subr.mxu0 0.0
    %353 = vmatpush1.msra.mxu0 0.0
    %354 = vmatprep.subr.mxu0 0.0
    %355 = vmatpush1.msra.mxu0 0.0
    %356 = vmatprep.subr.mxu0 0.0
    %357 = vmatpush1.msra.mxu0 0.0
    %358 = vmatprep.subr.mxu0 0.0
    %359 = vmatpush1.msra.mxu0 0.0
    %360 = vmatprep.mubr.f32.mxu0 0.0
    %361 = vmatmul.mubr.f32.gmra.mrb[0].mxu0 %v263
    %v362 = vpop.f32.mrb[0].mxu0
    %v363 = vadd.f32 0.0, %v362
    %v364 = vpop.f32.mrb[0].mxu0
    %365 = vdwg.mxu0
    %366 = vmatprep.subr.mxu0 0.0
    %367 = vmatpush1.msra.mxu0 %v264
    %368 = vmatprep.subr.mxu0 0.0
    %369 = vmatpush1.msra.mxu0 %v265
    %370 = vmatprep.subr.mxu0 0.0
    %371 = vmatpush1.msra.mxu0 %v266
    %372 = vmatprep.subr.mxu0 0.0
    %373 = vmatpush1.msra.mxu0 %v267
    %374 = vmatprep.subr.mxu0 0.0
    %375 = vmatpush1.msra.mxu0 %v268
    %376 = vmatprep.subr.mxu0 0.0
    %377 = vmatpush1.msra.mxu0 %v269
    %378 = vmatprep.subr.mxu0 0.0
    %379 = vmatpush1.msra.mxu0 %v270
    %380 = vmatprep.subr.mxu0 0.0
    %381 = vmatpush1.msra.mxu0 %v271
    %382 = vmatprep.subr.mxu0 0.0
    %383 = vmatpush1.msra.mxu0 %v272
    %384 = vmatprep.subr.mxu0 0.0
    %385 = vmatpush1.msra.mxu0 %v273
    %386 = vmatprep.subr.mxu0 0.0
    %387 = vmatpush1.msra.mxu0 %v274
    %388 = vmatprep.subr.mxu0 0.0
    %389 = vmatpush1.msra.mxu0 %v275
    %390 = vmatprep.subr.mxu0 0.0
    %391 = vmatpush1.msra.mxu0 %v276
    %392 = vmatprep.subr.mxu0 0.0
    %393 = vmatpush1.msra.mxu0 %v277
    %394 = vmatprep.subr.mxu0 0.0
    %395 = vmatpush1.msra.mxu0 %v278
    %396 = vmatprep.subr.mxu0 0.0
    %397 = vmatpush1.msra.mxu0 %v279
    %398 = vmatprep.subr.mxu0 0.0
    %399 = vmatpush1.msra.mxu0 0.0
    %400 = vmatprep.subr.mxu0 0.0
    %401 = vmatpush1.msra.mxu0 0.0
    %402 = vmatprep.subr.mxu0 0.0
    %403 = vmatpush1.msra.mxu0 0.0
    %404 = vmatprep.subr.mxu0 0.0
    %405 = vmatpush1.msra.mxu0 0.0
    %406 = vmatprep.subr.mxu0 0.0
    %407 = vmatpush1.msra.mxu0 0.0
    %408 = vmatprep.subr.mxu0 0.0
    %409 = vmatpush1.msra.mxu0 0.0
    %410 = vmatprep.subr.mxu0 0.0
    %411 = vmatpush1.msra.mxu0 0.0
    %412 = vmatprep.subr.mxu0 0.0
    %413 = vmatpush1.msra.mxu0 0.0
    %414 = vmatprep.subr.mxu0 0.0
    %415 = vmatpush1.msra.mxu0 0.0
    %416 = vmatprep.subr.mxu0 0.0
    %417 = vmatpush1.msra.mxu0 0.0
    %418 = vmatprep.subr.mxu0 0.0
    %419 = vmatpush1.msra.mxu0 0.0
    %420 = vmatprep.subr.mxu0 0.0
    %421 = vmatpush1.msra.mxu0 0.0
    %422 = vmatprep.subr.mxu0 0.0
    %423 = vmatpush1.msra.mxu0 0.0
    %424 = vmatprep.subr.mxu0 0.0
    %425 = vmatpush1.msra.mxu0 0.0
    %426 = vmatprep.subr.mxu0 0.0
    %427 = vmatpush1.msra.mxu0 0.0
    %428 = vmatprep.subr.mxu0 0.0
    %429 = vmatpush1.msra.mxu0 0.0
    %430 = vmatprep.mubr.f32.mxu0 0.0
    %431 = vmatmul.mubr.f32.gmra.mrb[0].mxu0 %v149
    %v432 = vpop.f32.mrb[0].mxu0
    %v433 = vadd.f32 %v363, %v432
    %v434 = vpop.f32.mrb[0].mxu0
    %435 = vdwg.mxu0
    %v436 = vld [vmem:[#allocation11] sm:$0x1]
    %v438 = vlaneseq
    %v439 = vshrl.u32 %v438, 7
    %v440 = vsub.s32 0, %v439
    %v441 = vrot.slane %v436, %v440
    %v443 = vadd.f32 %v433, %v441
    %v444 = vand.u32 2147483647, %v443
    %v445 = vsub.f32 0.0, %v444
    %v446 = vmul.f32 %v445, 1.442695
    %v447 = vpow.pop %v446
    %v448 = vadd.f32 %v447, 1.0
    %v449 = vrcp.pop %v448
    %v450 = vmul.f32 1.0, %v449
    %vm451 = vcmp.ge.f32.partialorder %v443, 0.0
    %v452 = vmul.f32 %v447, %v450
    %v453 = vsel %vm451, %v450, %v452
    %v454 = vld [vmem:[#allocation14] sm:$0xff]
    %v455 = vld [vmem:[#allocation14 + $0x8] sm:$0xff]
    %v456 = vld [vmem:[#allocation14 + $0x10] sm:$0xff]
    %v457 = vld [vmem:[#allocation14 + $0x18] sm:$0xff]
    %v458 = vld [vmem:[#allocation14 + $0x20] sm:$0xff]
    %v459 = vld [vmem:[#allocation14 + $0x28] sm:$0xff]
    %v460 = vld [vmem:[#allocation14 + $0x30] sm:$0xff]
    %v461 = vld [vmem:[#allocation14 + $0x38] sm:$0xff]
    %v462 = vld [vmem:[#allocation14 + $0x40] sm:$0xff]
    %v463 = vld [vmem:[#allocation14 + $0x48] sm:$0xff]
    %v464 = vld [vmem:[#allocation14 + $0x50] sm:$0xff]
    %v465 = vld [vmem:[#allocation14 + $0x58] sm:$0xff]
    %v466 = vld [vmem:[#allocation14 + $0x60] sm:$0xff]
    %v467 = vld [vmem:[#allocation14 + $0x68] sm:$0xff]
    %v468 = vld [vmem:[#allocation14 + $0x70] sm:$0xff]
    %v469 = vld [vmem:[#allocation14 + $0x78] sm:$0xff]
    %v470 = vld [vmem:[#allocation16] sm:$0xff]
    %v471 = vld [vmem:[#allocation16 + $0x8] sm:$0xff]
    %v472 = vld [vmem:[#allocation16 + $0x10] sm:$0xff]
    %v473 = vld [vmem:[#allocation16 + $0x18] sm:$0xff]
    %v474 = vld [vmem:[#allocation16 + $0x20] sm:$0xff]
    %v475 = vld [vmem:[#allocation16 + $0x28] sm:$0xff]
    %v476 = vld [vmem:[#allocation16 + $0x30] sm:$0xff]
    %v477 = vld [vmem:[#allocation16 + $0x38] sm:$0xff]
    %v478 = vld [vmem:[#allocation16 + $0x40] sm:$0xff]
    %v479 = vld [vmem:[#allocation16 + $0x48] sm:$0xff]
    %v480 = vld [vmem:[#allocation16 + $0x50] sm:$0xff]
    %v481 = vld [vmem:[#allocation16 + $0x58] sm:$0xff]
    %v482 = vld [vmem:[#allocation16 + $0x60] sm:$0xff]
    %v483 = vld [vmem:[#allocation16 + $0x68] sm:$0xff]
    %v484 = vld [vmem:[#allocation16 + $0x70] sm:$0xff]
    %v485 = vld [vmem:[#allocation16 + $0x78] sm:$0xff]
    %486 = vmatprep.subr.mxu0 0.0
    %487 = vmatpush1.msra.mxu0 %v470
    %488 = vmatprep.subr.mxu0 0.0
    %489 = vmatpush1.msra.mxu0 %v471
    %490 = vmatprep.subr.mxu0 0.0
    %491 = vmatpush1.msra.mxu0 %v472
    %492 = vmatprep.subr.mxu0 0.0
    %493 = vmatpush1.msra.mxu0 %v473
    %494 = vmatprep.subr.mxu0 0.0
    %495 = vmatpush1.msra.mxu0 %v474
    %496 = vmatprep.subr.mxu0 0.0
    %497 = vmatpush1.msra.mxu0 %v475
    %498 = vmatprep.subr.mxu0 0.0
    %499 = vmatpush1.msra.mxu0 %v476
    %500 = vmatprep.subr.mxu0 0.0
    %501 = vmatpush1.msra.mxu0 %v477
    %502 = vmatprep.subr.mxu0 0.0
    %503 = vmatpush1.msra.mxu0 %v478
    %504 = vmatprep.subr.mxu0 0.0
    %505 = vmatpush1.msra.mxu0 %v479
    %506 = vmatprep.subr.mxu0 0.0
    %507 = vmatpush1.msra.mxu0 %v480
    %508 = vmatprep.subr.mxu0 0.0
    %509 = vmatpush1.msra.mxu0 %v481
    %510 = vmatprep.subr.mxu0 0.0
    %511 = vmatpush1.msra.mxu0 %v482
    %512 = vmatprep.subr.mxu0 0.0
    %513 = vmatpush1.msra.mxu0 %v483
    %514 = vmatprep.subr.mxu0 0.0
    %515 = vmatpush1.msra.mxu0 %v484
    %516 = vmatprep.subr.mxu0 0.0
    %517 = vmatpush1.msra.mxu0 %v485
    %518 = vmatprep.subr.mxu0 0.0
    %519 = vmatpush1.msra.mxu0 0.0
    %520 = vmatprep.subr.mxu0 0.0
    %521 = vmatpush1.msra.mxu0 0.0
    %522 = vmatprep.subr.mxu0 0.0
    %523 = vmatpush1.msra.mxu0 0.0
    %524 = vmatprep.subr.mxu0 0.0
    %525 = vmatpush1.msra.mxu0 0.0
    %526 = vmatprep.subr.mxu0 0.0
    %527 = vmatpush1.msra.mxu0 0.0
    %528 = vmatprep.subr.mxu0 0.0
    %529 = vmatpush1.msra.mxu0 0.0
    %530 = vmatprep.subr.mxu0 0.0
    %531 = vmatpush1.msra.mxu0 0.0
    %532 = vmatprep.subr.mxu0 0.0
    %533 = vmatpush1.msra.mxu0 0.0
    %534 = vmatprep.subr.mxu0 0.0
    %535 = vmatpush1.msra.mxu0 0.0
    %536 = vmatprep.subr.mxu0 0.0
    %537 = vmatpush1.msra.mxu0 0.0
    %538 = vmatprep.subr.mxu0 0.0
    %539 = vmatpush1.msra.mxu0 0.0
    %540 = vmatprep.subr.mxu0 0.0
    %541 = vmatpush1.msra.mxu0 0.0
    %542 = vmatprep.subr.mxu0 0.0
    %543 = vmatpush1.msra.mxu0 0.0
    %544 = vmatprep.subr.mxu0 0.0
    %545 = vmatpush1.msra.mxu0 0.0
    %546 = vmatprep.subr.mxu0 0.0
    %547 = vmatpush1.msra.mxu0 0.0
    %548 = vmatprep.subr.mxu0 0.0
    %549 = vmatpush1.msra.mxu0 0.0
    %550 = vmatprep.mubr.f32.mxu0 0.0
    %551 = vmatmul.mubr.f32.gmra.mrb[0].mxu0 %v453
    %v552 = vpop.f32.mrb[0].mxu0
    %v553 = vadd.f32 0.0, %v552
    %v554 = vpop.f32.mrb[0].mxu0
    %555 = vdwg.mxu0
    %v556 = vmul.f32 %v553, %v252
    %v557 = vld [vmem:[#allocation13] sm:$0xff]
    %v558 = vld [vmem:[#allocation13 + $0x8] sm:$0xff]
    %v559 = vld [vmem:[#allocation13 + $0x10] sm:$0xff]
    %v560 = vld [vmem:[#allocation13 + $0x18] sm:$0xff]
    %v561 = vld [vmem:[#allocation13 + $0x20] sm:$0xff]
    %v562 = vld [vmem:[#allocation13 + $0x28] sm:$0xff]
    %v563 = vld [vmem:[#allocation13 + $0x30] sm:$0xff]
    %v564 = vld [vmem:[#allocation13 + $0x38] sm:$0xff]
    %v565 = vld [vmem:[#allocation13 + $0x40] sm:$0xff]
    %v566 = vld [vmem:[#allocation13 + $0x48] sm:$0xff]
    %v567 = vld [vmem:[#allocation13 + $0x50] sm:$0xff]
    %v568 = vld [vmem:[#allocation13 + $0x58] sm:$0xff]
    %v569 = vld [vmem:[#allocation13 + $0x60] sm:$0xff]
    %v570 = vld [vmem:[#allocation13 + $0x68] sm:$0xff]
    %v571 = vld [vmem:[#allocation13 + $0x70] sm:$0xff]
    %v572 = vld [vmem:[#allocation13 + $0x78] sm:$0xff]
    %573 = vmatprep.subr.mxu0 0.0
    %574 = vmatpush1.msra.mxu0 %v557
    %575 = vmatprep.subr.mxu0 0.0
    %576 = vmatpush1.msra.mxu0 %v558
    %577 = vmatprep.subr.mxu0 0.0
    %578 = vmatpush1.msra.mxu0 %v559
    %579 = vmatprep.subr.mxu0 0.0
    %580 = vmatpush1.msra.mxu0 %v560
    %581 = vmatprep.subr.mxu0 0.0
    %582 = vmatpush1.msra.mxu0 %v561
    %583 = vmatprep.subr.mxu0 0.0
    %584 = vmatpush1.msra.mxu0 %v562
    %585 = vmatprep.subr.mxu0 0.0
    %586 = vmatpush1.msra.mxu0 %v563
    %587 = vmatprep.subr.mxu0 0.0
    %588 = vmatpush1.msra.mxu0 %v564
    %589 = vmatprep.subr.mxu0 0.0
    %590 = vmatpush1.msra.mxu0 %v565
    %591 = vmatprep.subr.mxu0 0.0
    %592 = vmatpush1.msra.mxu0 %v566
    %593 = vmatprep.subr.mxu0 0.0
    %594 = vmatpush1.msra.mxu0 %v567
    %595 = vmatprep.subr.mxu0 0.0
    %596 = vmatpush1.msra.mxu0 %v568
    %597 = vmatprep.subr.mxu0 0.0
    %598 = vmatpush1.msra.mxu0 %v569
    %599 = vmatprep.subr.mxu0 0.0
    %600 = vmatpush1.msra.mxu0 %v570
    %601 = vmatprep.subr.mxu0 0.0
    %602 = vmatpush1.msra.mxu0 %v571
    %603 = vmatprep.subr.mxu0 0.0
    %604 = vmatpush1.msra.mxu0 %v572
    %605 = vmatprep.subr.mxu0 0.0
    %606 = vmatpush1.msra.mxu0 0.0
    %607 = vmatprep.subr.mxu0 0.0
    %608 = vmatpush1.msra.mxu0 0.0
    %609 = vmatprep.subr.mxu0 0.0
    %610 = vmatpush1.msra.mxu0 0.0
    %611 = vmatprep.subr.mxu0 0.0
    %612 = vmatpush1.msra.mxu0 0.0
    %613 = vmatprep.subr.mxu0 0.0
    %614 = vmatpush1.msra.mxu0 0.0
    %615 = vmatprep.subr.mxu0 0.0
    %616 = vmatpush1.msra.mxu0 0.0
    %617 = vmatprep.subr.mxu0 0.0
    %618 = vmatpush1.msra.mxu0 0.0
    %619 = vmatprep.subr.mxu0 0.0
    %620 = vmatpush1.msra.mxu0 0.0
    %621 = vmatprep.subr.mxu0 0.0
    %622 = vmatpush1.msra.mxu0 0.0
    %623 = vmatprep.subr.mxu0 0.0
    %624 = vmatpush1.msra.mxu0 0.0
    %625 = vmatprep.subr.mxu0 0.0
    %626 = vmatpush1.msra.mxu0 0.0
    %627 = vmatprep.subr.mxu0 0.0
    %628 = vmatpush1.msra.mxu0 0.0
    %629 = vmatprep.subr.mxu0 0.0
    %630 = vmatpush1.msra.mxu0 0.0
    %631 = vmatprep.subr.mxu0 0.0
    %632 = vmatpush1.msra.mxu0 0.0
    %633 = vmatprep.subr.mxu0 0.0
    %634 = vmatpush1.msra.mxu0 0.0
    %635 = vmatprep.subr.mxu0 0.0
    %636 = vmatpush1.msra.mxu0 0.0
    %637 = vmatprep.mubr.f32.mxu0 0.0
    %638 = vmatmul.mubr.f32.gmra.mrb[0].mxu0 %v556
    %v639 = vpop.f32.mrb[0].mxu0
    %v640 = vadd.f32 0.0, %v639
    %v641 = vpop.f32.mrb[0].mxu0
    %642 = vdwg.mxu0
    %643 = vmatprep.subr.mxu0 0.0
    %644 = vmatpush1.msra.mxu0 %v454
    %645 = vmatprep.subr.mxu0 0.0
    %646 = vmatpush1.msra.mxu0 %v455
    %647 = vmatprep.subr.mxu0 0.0
    %648 = vmatpush1.msra.mxu0 %v456
    %649 = vmatprep.subr.mxu0 0.0
    %650 = vmatpush1.msra.mxu0 %v457
    %651 = vmatprep.subr.mxu0 0.0
    %652 = vmatpush1.msra.mxu0 %v458
    %653 = vmatprep.subr.mxu0 0.0
    %654 = vmatpush1.msra.mxu0 %v459
    %655 = vmatprep.subr.mxu0 0.0
    %656 = vmatpush1.msra.mxu0 %v460
    %657 = vmatprep.subr.mxu0 0.0
    %658 = vmatpush1.msra.mxu0 %v461
    %659 = vmatprep.subr.mxu0 0.0
    %660 = vmatpush1.msra.mxu0 %v462
    %661 = vmatprep.subr.mxu0 0.0
    %662 = vmatpush1.msra.mxu0 %v463
    %663 = vmatprep.subr.mxu0 0.0
    %664 = vmatpush1.msra.mxu0 %v464
    %665 = vmatprep.subr.mxu0 0.0
    %666 = vmatpush1.msra.mxu0 %v465
    %667 = vmatprep.subr.mxu0 0.0
    %668 = vmatpush1.msra.mxu0 %v466
    %669 = vmatprep.subr.mxu0 0.0
    %670 = vmatpush1.msra.mxu0 %v467
    %671 = vmatprep.subr.mxu0 0.0
    %672 = vmatpush1.msra.mxu0 %v468
    %673 = vmatprep.subr.mxu0 0.0
    %674 = vmatpush1.msra.mxu0 %v469
    %675 = vmatprep.subr.mxu0 0.0
    %676 = vmatpush1.msra.mxu0 0.0
    %677 = vmatprep.subr.mxu0 0.0
    %678 = vmatpush1.msra.mxu0 0.0
    %679 = vmatprep.subr.mxu0 0.0
    %680 = vmatpush1.msra.mxu0 0.0
    %681 = vmatprep.subr.mxu0 0.0
    %682 = vmatpush1.msra.mxu0 0.0
    %683 = vmatprep.subr.mxu0 0.0
    %684 = vmatpush1.msra.mxu0 0.0
    %685 = vmatprep.subr.mxu0 0.0
    %686 = vmatpush1.msra.mxu0 0.0
    %687 = vmatprep.subr.mxu0 0.0
    %688 = vmatpush1.msra.mxu0 0.0
    %689 = vmatprep.subr.mxu0 0.0
    %690 = vmatpush1.msra.mxu0 0.0
    %691 = vmatprep.subr.mxu0 0.0
    %692 = vmatpush1.msra.mxu0 0.0
    %693 = vmatprep.subr.mxu0 0.0
    %694 = vmatpush1.msra.mxu0 0.0
    %695 = vmatprep.subr.mxu0 0.0
    %696 = vmatpush1.msra.mxu0 0.0
    %697 = vmatprep.subr.mxu0 0.0
    %698 = vmatpush1.msra.mxu0 0.0
    %699 = vmatprep.subr.mxu0 0.0
    %700 = vmatpush1.msra.mxu0 0.0
    %701 = vmatprep.subr.mxu0 0.0
    %702 = vmatpush1.msra.mxu0 0.0
    %703 = vmatprep.subr.mxu0 0.0
    %704 = vmatpush1.msra.mxu0 0.0
    %705 = vmatprep.subr.mxu0 0.0
    %706 = vmatpush1.msra.mxu0 0.0
    %707 = vmatprep.mubr.f32.mxu0 0.0
    %708 = vmatmul.mubr.f32.gmra.mrb[0].mxu0 %v453
    %v709 = vpop.f32.mrb[0].mxu0
    %v710 = vadd.f32 %v640, %v709
    %v711 = vpop.f32.mrb[0].mxu0
    %712 = vdwg.mxu0
    %713 = vst [vmem:[#allocation17] sm:$0xff] %v710
    // Predicated region
    $region74: #{tpu_custom_call.1} parent=1 // pred_check
      _
    $region75: #{tpu_custom_call.1} parent=1 // pred_check_branch
      %715 = sbr.rel (0) target = $region77
    $region76: #{tpu_custom_call.1} parent=1 // pred_region
      %s717 = ssub.s32 128, 128
      %718 = vsyncadd [#allocation4], %s717
      %s720 = sshll.u32 [#allocation17], 4
      %s721 = int_to_ptr.vmem [resolvable:$true] %s720
      %723 = dma.vmem_to_hbm [thread:$0]  %s721, 128, %s9, [#allocation4]
    $region77: #{tpu_custom_call.1} parent=1 // pred_fallthru
      _
    // Predicated region
    $region78: #{tpu_custom_call.1} parent=1 // pred_check
      _
    $region79: #{tpu_custom_call.1} parent=1 // pred_check_branch
      %725 = sbr.rel (0) target = $region81
    $region80: #{tpu_custom_call.1} parent=1 // pred_region
      %726 = dma.done [#allocation4], 128
    $region81: #{tpu_custom_call.1} parent=1 // pred_fallthru
      _
    %727 = vsyncpa [#allocation3], 1
    %728 = vsyncpa [#allocation6], 1
    %729 = vsyncpa [#allocation9], 1
    %730 = vsyncpa [#allocation12], 1
    %731 = vsyncpa [#allocation15], 1
    %732 = vsyncpa [#allocation4], 1

</llo_original>
